<compile_context>
chip_gen: v5e
topology: v5e:2x2
jax: 0.10.0
libtpu: 0.0.40
codegen_flags: <defaults>
</compile_context>

<pallas_src>
import functools

import jax
import jax.numpy as jnp
from jax import lax
from jax.experimental import pallas as pl
from jax.experimental.pallas import tpu as pltpu


def _round_up(x, m):
    return ((x + m - 1) // m) * m


def _pick_k_tiling(c_in, max_k):
    """Return (tk, padded_K). padded_K is a multiple of tk (pad <= 127 cols)."""
    if c_in <= max_k:
        return c_in, c_in
    # Prefer a tile that divides C_in exactly (no padding at all).
    for cand in (2048, 1024, 768, 512, 384, 256, 128):
        if cand <= max_k and c_in % cand == 0:
            return cand, c_in
    # Otherwise pad C_in up to a multiple of 128 and pick a divisor of that.
    k128 = _round_up(c_in, 128)
    for cand in (2048, 1024, 768, 512, 384, 256, 128):
        if cand <= max_k and k128 % cand == 0:
            return cand, k128
    return 128, k128  # 128 always divides k128


# ---------------------------------------------------------------------------
# Kernels. Weight tile is (tn, tk): contract last dim of x with last dim of w.
# ---------------------------------------------------------------------------
_DN = (((1,), (1,)), ((), ()))  # dot_general dims: x (tm,tk) . w (tn,tk) -> (tm,tn)


def _linear_kernel_single_k(x_ref, w_ref, b_ref, o_ref):
    acc = lax.dot_general(x_ref[...], w_ref[...], _DN,
                          preferred_element_type=jnp.float32)
    o_ref[...] = (acc + b_ref[...].astype(jnp.float32)).astype(o_ref.dtype)


def _linear_kernel_k_tiled_f32(x_ref, w_ref, b_ref, o_ref):
    # f32 output: accumulate directly into the resident output block.
    k = pl.program_id(2)

    @pl.when(k == 0)
    def _init():
        o_ref[...] = jnp.broadcast_to(b_ref[...].astype(jnp.float32), o_ref.shape)

    o_ref[...] += lax.dot_general(x_ref[...], w_ref[...], _DN,
                                  preferred_element_type=jnp.float32)


def _linear_kernel_k_tiled_acc(x_ref, w_ref, b_ref, o_ref, acc_ref):
    # Low-precision output: f32 VMEM accumulator + finalize cast.
    k = pl.program_id(2)

    @pl.when(k == 0)
    def _init():
        acc_ref[...] = jnp.zeros_like(acc_ref)

    acc_ref[...] += lax.dot_general(x_ref[...], w_ref[...], _DN,
                                    preferred_element_type=jnp.float32)

    @pl.when(k == pl.num_programs(2) - 1)
    def _finalize():
        o_ref[...] = (acc_ref[...] + b_ref[...].astype(jnp.float32)).astype(o_ref.dtype)


@functools.partial(jax.jit, static_argnames=("tile_m", "tile_n", "tile_k"))
def custom_linear(x, weight, bias, *, tile_m=512, tile_n=512, tile_k=1024):
    """x: (B, N, C_in); weight: (C_out, C_in); bias: (C_out,) -> (B, N, C_out)."""
    B, N, C_in = x.shape
    C_out = weight.shape[0]
    M = B * N

    x2d = x.reshape(M, C_in)          # contiguous reshape: free
    b2d = bias.reshape(1, C_out)

    # ---- K tiling (zero-pad C_in if needed; exact for a matmul) -------------
    tk, K_pad = _pick_k_tiling(C_in, tile_k)
    if K_pad != C_in:
        x2d = jnp.pad(x2d, ((0, 0), (0, K_pad - C_in)))
        w = jnp.pad(weight, ((0, 0), (0, K_pad - C_in)))
    else:
        w = weight

    # ---- M / N tiling --------------------------------------------------------
    # Sublane packing: 8 rows/vreg for 4-byte dtypes, 16 for 2-byte (bf16).
    row_mult = 8 if x.dtype.itemsize >= 4 else 16
    tm = _round_up(min(tile_m, _round_up(M, row_mult)), row_mult)
    if C_out <= tile_n:
        tn = C_out
    else:
        tn = max(128, (tile_n // 128) * 128)

    grid_m = pl.cdiv(M, tm)
    grid_n = pl.cdiv(C_out, tn)
    # Give both v7x TensorCores work: ensure >=2 programs on the parallel axes.
    if grid_m * grid_n == 1:
        if M > row_mult:
            tm = _round_up(pl.cdiv(M, 2), row_mult)
        elif C_out >= 256:
            tn = _round_up(pl.cdiv(C_out, 2), 128)
        grid_m = pl.cdiv(M, tm)
        grid_n = pl.cdiv(C_out, tn)
    grid_k = K_pad // tk

    out_dtype = x.dtype
    needs_scratch = grid_k > 1 and out_dtype != jnp.float32

    # ---- VMEM budget (double-buffered tiles), capped below v7x's 64 MiB -----
    footprint = (2 * tm * tk * x.dtype.itemsize          # x tiles
                 + 2 * tn * tk * w.dtype.itemsize        # weight tiles
                 + 2 * 8 * _round_up(tn, 128) * 4        # bias tiles (padded)
                 + 2 * tm * tn * out_dtype.itemsize)     # output tiles
    if needs_scratch:
        footprint += tm * tn * 4
    vmem_limit = int(min(max(footprint * 3 // 2 + (2 << 20), 32 << 20), 56 << 20))

    # ---- Cost hint (scheduler only; not roofline-accurate) -------------------
    cost = pl.CostEstimate(
        flops=2 * M * C_in * C_out,
        transcendentals=0,
        bytes_accessed=(M * C_in * x.dtype.itemsize
                        + C_in * C_out * w.dtype.itemsize
                        + C_out * bias.dtype.itemsize
                        + M * C_out * out_dtype.itemsize),
    )

    if grid_k == 1:
        grid_spec = pltpu.PrefetchScalarGridSpec(
            num_scalar_prefetch=0,
            grid=(grid_m, grid_n),
            in_specs=[
                pl.BlockSpec((tm, K_pad), lambda i, j: (i, 0)),   # x rows
                pl.BlockSpec((tn, K_pad), lambda i, j: (j, 0)),   # weight rows
                pl.BlockSpec((1, tn), lambda i, j: (0, j)),       # bias
            ],
            out_specs=pl.BlockSpec((tm, tn), lambda i, j: (i, j)),
        )
        kernel = _linear_kernel_single_k
        dims = ("parallel", "parallel")
    else:
        grid_spec = pltpu.PrefetchScalarGridSpec(
            num_scalar_prefetch=0,
            grid=(grid_m, grid_n, grid_k),
            in_specs=[
                pl.BlockSpec((tm, tk), lambda i, j, k: (i, k)),
                pl.BlockSpec((tn, tk), lambda i, j, k: (j, k)),
                pl.BlockSpec((1, tn), lambda i, j, k: (0, j)),
            ],
            out_specs=pl.BlockSpec((tm, tn), lambda i, j, k: (i, j)),
            scratch_shapes=(
                [pltpu.VMEM((tm, tn), jnp.float32)] if needs_scratch else []
            ),
        )
        kernel = (_linear_kernel_k_tiled_acc if needs_scratch
                  else _linear_kernel_k_tiled_f32)
        dims = ("parallel", "parallel", "arbitrary")

    out2d = pl.pallas_call(
        kernel,
        out_shape=jax.ShapeDtypeStruct((M, C_out), out_dtype),
        grid_spec=grid_spec,
        compiler_params=pltpu.CompilerParams(
            dimension_semantics=dims, vmem_limit_bytes=vmem_limit),
        cost_estimate=cost,
    )(x2d, w, b2d)

    return out2d.reshape(B, N, C_out)


if __name__ == "__main__":
    key = jax.random.PRNGKey(0)
    kx, kw, kb, kx2, kw2, kb2, kx3, kw3, kb3 = jax.random.split(key, 9)

    # 1) Small shapes consistent with the module: B=2, N=8 positions, C=32.
    B, N, C_in, C_out = 2, 8, 32, 32
    x = jax.random.normal(kx, (B, N, C_in), dtype=jnp.float32)
    weight = 0.1 * jax.random.normal(kw, (C_out, C_in), dtype=jnp.float32)  # ~N(0,0.1)
    bias = 0.1 * jax.random.normal(kb, (C_out,), dtype=jnp.float32)
    y = custom_linear(x, weight, bias)
    jax.block_until_ready(y)
    y_ref = jnp.einsum("bni,oi->bno", x, weight) + bias[None, None, :]
    assert y.shape == (B, N, C_out)
    assert jnp.allclose(y, y_ref, atol=1e-5, rtol=1e-5)

    # 2) K-tiled, f32-accumulate-in-output path with non-divisible C_in
    #    (exercises zero-padding of K and ragged M edge).
    B2, N2, C_in2, C_out2 = 2, 520, 1100, 256
    x2 = jax.random.normal(kx2, (B2, N2, C_in2), dtype=jnp.float32)
    w2 = 0.1 * jax.random.normal(kw2, (C_out2, C_in2), dtype=jnp.float32)
    b2 = 0.1 * jax.random.normal(kb2, (C_out2,), dtype=jnp.float32)
    y2 = custom_linear(x2, w2, b2)
    jax.block_until_ready(y2)
    y2_ref = jnp.einsum("bni,oi->bno", x2, w2) + b2[None, None, :]
    assert jnp.allclose(y2, y2_ref, atol=2e-3, rtol=2e-3)

    # 3) K-tiled scratch-accumulator path (bf16 output).
    B3, N3, C_in3, C_out3 = 2, 64, 2048, 256
    x3 = jax.random.normal(kx3, (B3, N3, C_in3), dtype=jnp.bfloat16)
    w3 = (0.1 * jax.random.normal(kw3, (C_out3, C_in3))).astype(jnp.bfloat16)
    b3 = (0.1 * jax.random.normal(kb3, (C_out3,))).astype(jnp.bfloat16)
    y3 = custom_linear(x3, w3, b3)
    jax.block_until_ready(y3)
    y3_ref = (jnp.einsum("bni,oi->bno", x3.astype(jnp.float32), w3.astype(jnp.float32))
              + b3.astype(jnp.float32)[None, None, :])
    assert jnp.allclose(y3.astype(jnp.float32), y3_ref, atol=5e-2, rtol=5e-2)

    print("KERNEL_OK")
</pallas_src>

<mosaic_0001>
module attributes {stable_mosaic.version = 11 : i64} {
  func.func @_linear_kernel_single_k(%arg0: i32, %arg1: i32, %arg2: memref<8x32xf32, #tpu.memory_space<vmem>>, %arg3: memref<32x32xf32, #tpu.memory_space<vmem>>, %arg4: memref<1x32xf32, #tpu.memory_space<vmem>>, %arg5: memref<8x32xf32, #tpu.memory_space<vmem>>) attributes {dimension_semantics = [#tpu.dimension_semantics<parallel>, #tpu.dimension_semantics<parallel>], iteration_bounds = array<i64: 2, 1>, scalar_prefetch = 0 : i64, scratch_operands = 0 : i64, tpu.core_type = #tpu.core_type<tc>, window_params = [{transform_indices = @transform_0, window_bounds = array<i64: 8, 32>}, {transform_indices = @transform_1, window_bounds = array<i64: 32, 32>}, {transform_indices = @transform_2, window_bounds = array<i64: 1, 32>}, {transform_indices = @transform_3, window_bounds = array<i64: 8, 32>}]} {
    %c0 = arith.constant 0 : index
    %c0_0 = arith.constant 0 : index
    %0 = vector.load %arg2[%c0, %c0_0] : memref<8x32xf32, #tpu.memory_space<vmem>>, vector<8x32xf32>
    %c0_1 = arith.constant 0 : index
    %c0_2 = arith.constant 0 : index
    %1 = vector.load %arg3[%c0_1, %c0_2] : memref<32x32xf32, #tpu.memory_space<vmem>>, vector<32x32xf32>
    %cst = arith.constant dense<0.000000e+00> : vector<8x32xf32>
    %2 = tpu.matmul %0, %1, %cst {dimension_numbers = #tpu.dot_dimension_numbers<[1], [1], [0], [0], [0, 0, 1, 0], [], []>} : vector<8x32xf32>, vector<32x32xf32>, vector<8x32xf32> -> vector<8x32xf32>
    %c0_3 = arith.constant 0 : index
    %c0_4 = arith.constant 0 : index
    %3 = vector.load %arg4[%c0_3, %c0_4] : memref<1x32xf32, #tpu.memory_space<vmem>>, vector<1x32xf32>
    %4 = vector.broadcast %3 : vector<1x32xf32> to vector<8x32xf32>
    %5 = arith.addf %2, %4 : vector<8x32xf32>
    %c0_5 = arith.constant 0 : index
    %c0_6 = arith.constant 0 : index
    %6 = vector.load %arg5[%c0_5, %c0_6] : memref<8x32xf32, #tpu.memory_space<vmem>>, vector<8x32xf32>
    tpu.vector_store %arg5[%c0_5, %c0_6], %5 {strides = array<i32>} : memref<8x32xf32, #tpu.memory_space<vmem>>, vector<8x32xf32>,
    return
  }
  func.func @transform_0(%arg0: i32, %arg1: i32) -> (i32, i32) {
    %c0_i32 = arith.constant 0 : i32
    %c0_i32_0 = arith.constant 0 : i32
    return %arg0, %c0_i32 : i32, i32
  }
  func.func @transform_1(%arg0: i32, %arg1: i32) -> (i32, i32) {
    %c0_i32 = arith.constant 0 : i32
    %c0_i32_0 = arith.constant 0 : i32
    return %arg1, %c0_i32 : i32, i32
  }
  func.func @transform_2(%arg0: i32, %arg1: i32) -> (i32, i32) {
    %c0_i32 = arith.constant 0 : i32
    %c0_i32_0 = arith.constant 0 : i32
    return %c0_i32, %arg1 : i32, i32
  }
  func.func @transform_3(%arg0: i32, %arg1: i32) -> (i32, i32) {
    %c0_i32 = arith.constant 0 : i32
    return %arg0, %arg1 : i32, i32
  }
}

</mosaic_0001>

<llo_original>
// kernel: custom_linear.1
$region0: #{custom_linear.1}
  #allocation0 [shape = 'u32[]', space=smem, size = 0x4, offset = 0x4, fixed_abs, tag = 'smem constant byte address 0x4 - core index']
  #allocation1 [shape = 'u32[72,128]{1,0:T(1,128)}', space=vmem, size = 0x9000, scoped, tag = 'internal scratch']
  %s0 = inlined_call_operand.hbm [shape: f32[16,32], index: 0, kind: input, shape index: {}]
  %s1 = inlined_call_operand.hbm [shape: f32[32,32], index: 1, kind: input, shape index: {}]
  %s2 = inlined_call_operand.vmem [shape: f32[1,32], index: 2, kind: input, shape index: {}]
  %s3 = inlined_call_operand.hbm [shape: f32[16,32], index: 3, kind: output, shape index: {}]
  %s4 = sld [smem:[#allocation0]]
  $region53: #{custom_linear.1} parent=0
    _
  %s6 = ssub.s32 1, %s4
  %s7 = scalar_select 0, %s6, %s4
  $region1: #{custom_linear.1} parent=0
    #allocation2 [shape = 'u8[8192]{0}', space=vmem, size = 0x2000, scoped, tag = 'input window, operand 0']
    #allocation3 [shape = 's32[2]{0}', space=sflag, size = 0x8, scoped, tag = 'scoped memory for custom_linear.1']
    #allocation4 [shape = 's32[2]{0}', space=sflag, size = 0x8, scoped, tag = 'scoped memory for custom_linear.1']
    #allocation5 [shape = 'u8[16384]{0}', space=vmem, size = 0x4000, scoped, tag = 'input window, operand 1, single buffered']
    #allocation6 [shape = 's32[1]{0}', space=sflag, size = 0x4, scoped, tag = 'scoped memory for custom_linear.1']
    #allocation7 [shape = 'u8[8192]{0}', space=vmem, size = 0x2000, scoped, tag = 'output window, operand 0']
    %8 = vsyncpa [#allocation3], 0
    %s9 = scalar_lea.sflag [#allocation3], 1
    %10 = vsyncpa %s9, 0
    %11 = vsyncpa [#allocation6], 0
    %12 = vsyncpa [#allocation4], 0
    %s13 = scalar_lea.sflag [#allocation4], 1
    %14 = vsyncpa %s13, 0
    loop: start=0, step=1, limit=4
    $region2: #{custom_linear.1} parent=1 // loop_pre_header
      _
    $region3: #{custom_linear.1} parent=1 // loop_header
      %s16 = sphi 0, %s20
      %p17 = scmp.ge.s32.totalorder %s16, 4
      %s23 = sphi 0, %s35
      %s24 = sphi 0, %s31
      %s25 = sphi 0, %s23
      %s26 = sphi 0, %s24
      %s27 = sphi 0, %s25
      %s28 = sphi 0, %s26
      %s38 = sphi 0, %s40
      %s41 = sphi 0, %s38
      %s42 = sphi 0, %s41
      %s58 = sphi 0, %s42
      %s64 = sphi 0, %s66
      %s67 = sphi 0, %s64
      %s68 = sphi 0, %s67
      %s84 = sphi 0, %s68
      %s90 = sphi 0, %s92
      %s93 = sphi 0, %s90
      %s94 = sphi 0, %s93
      %s110 = sphi 0, %s94
      %s118 = sphi 0, %s120
      %s121 = sphi 0, %s118
      %s122 = sphi 0, %s121
      %s138 = sphi 0, %s122
    $region4: #{custom_linear.1} parent=1 // loop_header_branch
      %19 = sbr.rel (%p17) target = $region8
    $region5: #{custom_linear.1} parent=1 // loop_body
      %s21 = ssub.s32 %s16, 1
      %s22 = ssub.s32 %s16, 2
      %s29 = sadd.s32 1, %s24
      %p30 = scmp.ge.s32.totalorder %s29, 1
      %s31 = scalar_select %p30, 0, %s29
      %s32 = sadd.s32 1, %s23
      %s33 = scalar_select %p30, %s32, %s23
      %p34 = scmp.ge.s32.totalorder %s33, 2
      %s35 = scalar_select %p34, 0, %s33
      %s36 = ssub.s32 %s23, %s35
      %p37 = scmp.eq.s32.totalorder %s36, 0
      %s39 = sadd.s32 %s38, 1
      %s40 = scalar_select %p37, %s38, %s39
      %p43 = pneg %p37
      %p44 = scmp.eq.s32.totalorder %s16, 1
      %p45 = por %p43, %p44
      %p46 = scmp.ne.s32.totalorder %s38, %s41
      %p47 = scmp.eq.s32.totalorder %s16, 0
      %p48 = por %p46, %p47
      %p49 = scmp.ne.s32.totalorder %s38, %s41
      %p50 = scmp.eq.s32.totalorder %s21, 1
      %p51 = por %p49, %p50
      %p52 = scmp.ne.s32.totalorder %s41, %s42
      %p53 = scmp.eq.s32.totalorder %s21, 0
      %p54 = por %p52, %p53
      %p55 = scmp.ne.s32.totalorder %s41, %s42
      %p56 = scmp.eq.s32.totalorder %s22, 1
      %p57 = por %p55, %p56
      %p59 = scmp.ne.s32.totalorder %s42, %s58
      %p60 = scmp.eq.s32.totalorder %s22, 0
      %p61 = por %p59, %p60
      %s62 = ssub.s32 %s24, %s31
      %p63 = scmp.eq.s32.totalorder %s62, 0
      %s65 = sadd.s32 %s64, 1
      %s66 = scalar_select %p63, %s64, %s65
      %p69 = pneg %p63
      %p70 = scmp.eq.s32.totalorder %s16, 1
      %p71 = por %p69, %p70
      %p72 = scmp.ne.s32.totalorder %s64, %s67
      %p73 = scmp.eq.s32.totalorder %s16, 0
      %p74 = por %p72, %p73
      %p75 = scmp.ne.s32.totalorder %s64, %s67
      %p76 = scmp.eq.s32.totalorder %s21, 1
      %p77 = por %p75, %p76
      %p78 = scmp.ne.s32.totalorder %s67, %s68
      %p79 = scmp.eq.s32.totalorder %s21, 0
      %p80 = por %p78, %p79
      %p81 = scmp.ne.s32.totalorder %s67, %s68
      %p82 = scmp.eq.s32.totalorder %s22, 1
      %p83 = por %p81, %p82
      %p85 = scmp.ne.s32.totalorder %s68, %s84
      %p86 = scmp.eq.s32.totalorder %s22, 0
      %p87 = por %p85, %p86
      %s88 = ssub.s32 %s24, %s31
      %p89 = scmp.eq.s32.totalorder %s88, 0
      %s91 = sadd.s32 %s90, 1
      %s92 = scalar_select %p89, %s90, %s91
      %p95 = pneg %p89
      %p96 = scmp.eq.s32.totalorder %s16, 1
      %p97 = por %p95, %p96
      %p98 = scmp.ne.s32.totalorder %s90, %s93
      %p99 = scmp.eq.s32.totalorder %s16, 0
      %p100 = por %p98, %p99
      %p101 = scmp.ne.s32.totalorder %s90, %s93
      %p102 = scmp.eq.s32.totalorder %s21, 1
      %p103 = por %p101, %p102
      %p104 = scmp.ne.s32.totalorder %s93, %s94
      %p105 = scmp.eq.s32.totalorder %s21, 0
      %p106 = por %p104, %p105
      %p107 = scmp.ne.s32.totalorder %s93, %s94
      %p108 = scmp.eq.s32.totalorder %s22, 1
      %p109 = por %p107, %p108
      %p111 = scmp.ne.s32.totalorder %s94, %s110
      %p112 = scmp.eq.s32.totalorder %s22, 0
      %p113 = por %p111, %p112
      %s114 = ssub.s32 %s23, %s35
      %s115 = ssub.s32 %s24, %s31
      %s116 = sor.u32 %s114, %s115
      %p117 = scmp.eq.s32.totalorder %s116, 0
      %s119 = sadd.s32 %s118, 1
      %s120 = scalar_select %p117, %s118, %s119
      %p123 = pneg %p117
      %p124 = scmp.eq.s32.totalorder %s16, 1
      %p125 = por %p123, %p124
      %p126 = scmp.ne.s32.totalorder %s118, %s121
      %p127 = scmp.eq.s32.totalorder %s16, 0
      %p128 = por %p126, %p127
      %p129 = scmp.ne.s32.totalorder %s118, %s121
      %p130 = scmp.eq.s32.totalorder %s21, 1
      %p131 = por %p129, %p130
      %p132 = scmp.ne.s32.totalorder %s121, %s122
      %p133 = scmp.eq.s32.totalorder %s21, 0
      %p134 = por %p132, %p133
      %p135 = scmp.ne.s32.totalorder %s121, %s122
      %p136 = scmp.eq.s32.totalorder %s22, 1
      %p137 = por %p135, %p136
      %p139 = scmp.ne.s32.totalorder %s122, %s138
      %p140 = scmp.eq.s32.totalorder %s22, 0
      %p141 = por %p139, %p140
      %p142 = scmp.le.s32.totalorder 1, %s16
      %p143 = scmp.lt.s32.totalorder %s16, 3
      %p144 = pnand %p142, %p143
      %p145 = pneg %p144
      // Predicated region
      $region9: #{custom_linear.1} parent=5 // pred_check
        _
      $region10: #{custom_linear.1} parent=5 // pred_check_branch
        %147 = sbr.rel (%p144) target = $region12
      $region11: #{custom_linear.1} parent=5 // pred_region
        %s148 = ssub.s32 %s16, 1
        // Predicated region
        $region13: #{custom_linear.1} parent=11 // pred_check
          %p149 = pneg %p80
        $region14: #{custom_linear.1} parent=11 // pred_check_branch
          %151 = sbr.rel (%p149) target = $region16
        $region15: #{custom_linear.1} parent=11 // pred_region
          %s152 = smul.u32 4, %s26
          %154 = vsyncadd [#allocation6], 0
          %s155 = smul.addr %s152, 8
          %s156 = scalar_lea.hbm %s1, %s155
          %s157 = sshll.u32 %s156, 4
          %s158 = int_to_ptr.hbm [resolvable:$true] %s157
          %s159 = sshll.u32 [#allocation5], 4
          %s160 = int_to_ptr.vmem [resolvable:$true] %s159
          %165 = dma.hbm_to_vmem [thread:$0]  %s158, 512, %s160, [#allocation6], 128, 128, 8
        $region16: #{custom_linear.1} parent=11 // pred_fallthru
          _
        // Predicated region
        $region17: #{custom_linear.1} parent=11 // pred_check
          %p166 = pneg %p106
        $region18: #{custom_linear.1} parent=11 // pred_check_branch
          %168 = sbr.rel (%p166) target = $region20
        $region19: #{custom_linear.1} parent=11 // pred_region
          %p169 = scmp.lt.s32.totalorder %s26, 0
          %s170 = scalar_select %p169, %s26, 0
          %s171 = scalar_lea.vmem %s2, %s170
        $region20: #{custom_linear.1} parent=11 // pred_fallthru
          _
      $region12: #{custom_linear.1} parent=5 // pred_fallthru
        _
      %p172 = scmp.lt.s32.totalorder %s16, 2
      // Predicated region
      $region21: #{custom_linear.1} parent=5 // pred_check
        %p173 = pneg %p172
      $region22: #{custom_linear.1} parent=5 // pred_check_branch
        %175 = sbr.rel (%p173) target = $region24
      $region23: #{custom_linear.1} parent=5 // pred_region
        // Predicated region
        $region25: #{custom_linear.1} parent=23 // pred_check
          %p176 = pneg %p48
        $region26: #{custom_linear.1} parent=23 // pred_check_branch
          %178 = sbr.rel (%p176) target = $region28
        $region27: #{custom_linear.1} parent=23 // pred_region
          %s179 = sand.u32 %s38, 1
          %s180 = scalar_lea.sflag [#allocation3], %s179
          %s181 = sand.u32 %s38, 1
          %s182 = smul.addr %s181, 8
          %s183 = scalar_lea.vmem [#allocation2], %s182
          %185 = vsyncadd %s180, 0
          %s186 = smul.addr %s23, 8
          %s187 = scalar_lea.hbm %s0, %s186
          %s189 = sshll.u32 %s187, 4
          %s190 = int_to_ptr.hbm [resolvable:$true] %s189
          %s191 = sshll.u32 %s183, 4
          %s192 = int_to_ptr.vmem [resolvable:$true] %s191
          %194 = dma.hbm_to_vmem [thread:$0]  %s190, 128, %s192, %s180
        $region28: #{custom_linear.1} parent=23 // pred_fallthru
          _
      $region24: #{custom_linear.1} parent=5 // pred_fallthru
        _
      %p195 = scmp.le.s32.totalorder 1, %s16
      %p196 = scmp.lt.s32.totalorder %s16, 3
      %p197 = pnand %p195, %p196
      %p198 = pneg %p197
      // Predicated region
      $region29: #{custom_linear.1} parent=5 // pred_check
        _
      $region30: #{custom_linear.1} parent=5 // pred_check_branch
        %200 = sbr.rel (%p197) target = $region32
      $region31: #{custom_linear.1} parent=5 // pred_region
        %s201 = ssub.s32 %s16, 1
        %s202 = sand.u32 %s41, 1
        %s203 = scalar_lea.sflag [#allocation3], %s202
        %s204 = sand.u32 %s41, 1
        %s205 = smul.addr %s204, 8
        %s206 = scalar_lea.vmem [#allocation2], %s205
        // Predicated region
        $region33: #{custom_linear.1} parent=31 // pred_check
          %p207 = pneg %p54
        $region34: #{custom_linear.1} parent=31 // pred_check_branch
          %209 = sbr.rel (%p207) target = $region36
        $region35: #{custom_linear.1} parent=31 // pred_region
          %211 = dma.done %s203, 128
        $region36: #{custom_linear.1} parent=31 // pred_fallthru
          _
        // Predicated region
        $region37: #{custom_linear.1} parent=31 // pred_check
          %p212 = pneg %p80
        $region38: #{custom_linear.1} parent=31 // pred_check_branch
          %214 = sbr.rel (%p212) target = $region40
        $region39: #{custom_linear.1} parent=31 // pred_region
          %216 = dma.done [#allocation6], 512
        $region40: #{custom_linear.1} parent=31 // pred_fallthru
          _
        %s217 = sand.u32 %s41, 1
        %s218 = scalar_lea.sflag [#allocation3], %s217
        %s219 = sand.u32 %s41, 1
        %s220 = smul.addr %s219, 8
        %s221 = scalar_lea.vmem [#allocation2], %s220
        %p222 = pneg %p54
        %p223 = pneg %p51
        %p224 = pneg %p80
        %p225 = pneg %p77
        %p226 = scmp.lt.s32.totalorder %s26, 0
        %s227 = scalar_select %p226, %s26, 0
        %s228 = scalar_lea.vmem %s2, %s227
        %p229 = pneg %p106
        %p230 = pneg %p103
        %p231 = pneg %p134
        %p232 = pneg %p131
        %s233 = sand.u32 %s121, 1
        %s234 = scalar_lea.sflag [#allocation4], %s233
        %s235 = sand.u32 %s121, 1
        %s236 = smul.addr %s235, 8
        %s237 = scalar_lea.vmem [#allocation7], %s236
        %s238 = smul.u32 4, %s26
        %p239 = scmp.lt.s32.totalorder %s26, 0
        %s240 = scalar_select %p239, %s26, 0
        %s241 = scalar_lea.vmem %s2, %s240
        %v242 = vld [vmem:[%s206] sm:$0xff]
        %v243 = vld [vmem:[#allocation5] sm:$0xff]
        %v244 = vld [vmem:[#allocation5 + $0x8] sm:$0xff]
        %v245 = vld [vmem:[#allocation5 + $0x10] sm:$0xff]
        %v246 = vld [vmem:[#allocation5 + $0x18] sm:$0xff]
        %v247 = vld [vmem:[%s241] sm:$0x1]
        %v249 = vperm.slane %v247, 0
        %vm251 = vcmask 261120
        %v253 = vsel %vm251, %v242, 0
        %v256 = vsel %vm251, %v243, 0
        %v259 = vsel %vm251, %v244, 0
        %v262 = vsel %vm251, %v245, 0
        %v265 = vsel %vm251, %v246, 0
        %267 = vmatpush.xpose.msra.mxu0 0.0
        %268 = vmatpush.xpose.msra.mxu0 0.0
        %269 = vmatpush.xpose.msra.mxu0 0.0
        %270 = vmatpush.xpose.msra.mxu0 0.0
        %271 = vmatpush.xpose.msra.mxu0 0.0
        %272 = vmatpush.xpose.msra.mxu0 0.0
        %273 = vmatpush.xpose.msra.mxu0 0.0
        %274 = vmatpush.xpose.msra.mxu0 0.0
        %275 = vmatpush.xpose.msra.mxu0 0.0
        %276 = vmatpush.xpose.msra.mxu0 0.0
        %277 = vmatpush.xpose.msra.mxu0 0.0
        %278 = vmatpush.xpose.msra.mxu0 0.0
        %279 = vmatpush.xpose.msra.mxu0 %v265
        %280 = vmatpush.xpose.msra.mxu0 %v262
        %281 = vmatpush.xpose.msra.mxu0 %v259
        %282 = vmatpush.xpose.msra.mxu0 %v256
        %283 = vmatmul.f32.gmra.mxu0 %v253
        %v284 = vpop.f32.mrf.mxu0
        %v285 = vadd.f32 %v249, %v284
        %286 = vdwg.mxu0
        %287 = vst.msk [vmem:[%s237] sm:$0xff] %vm251, %v285
        %s288 = sand.u32 %s121, 1
        %s289 = scalar_lea.sflag [#allocation4], %s288
        %s290 = sand.u32 %s121, 1
        %s291 = smul.addr %s290, 8
        %s292 = scalar_lea.vmem [#allocation7], %s291
        // Predicated region
        $region41: #{custom_linear.1} parent=31 // pred_check
          %p293 = pneg %p131
        $region42: #{custom_linear.1} parent=31 // pred_check_branch
          %295 = sbr.rel (%p293) target = $region44
        $region43: #{custom_linear.1} parent=31 // pred_region
          %297 = vsyncadd %s289, 0
          %s298 = sadd.s32 %s26, %s25
          %s299 = smul.addr %s298, 8
          %s300 = scalar_lea.hbm %s3, %s299
          %s302 = sshll.u32 %s292, 4
          %s303 = int_to_ptr.vmem [resolvable:$true] %s302
          %s304 = sshll.u32 %s300, 4
          %s305 = int_to_ptr.hbm [resolvable:$true] %s304
          %307 = dma.vmem_to_hbm [thread:$0]  %s303, 128, %s305, %s289
        $region44: #{custom_linear.1} parent=31 // pred_fallthru
          _
      $region32: #{custom_linear.1} parent=5 // pred_fallthru
        _
      %p308 = scmp.le.s32.totalorder 2, %s16
      // Predicated region
      $region45: #{custom_linear.1} parent=5 // pred_check
        %p309 = pneg %p308
      $region46: #{custom_linear.1} parent=5 // pred_check_branch
        %311 = sbr.rel (%p309) target = $region48
      $region47: #{custom_linear.1} parent=5 // pred_region
        %s312 = ssub.s32 %s16, 2
        // Predicated region
        $region49: #{custom_linear.1} parent=47 // pred_check
          %p313 = pneg %p137
        $region50: #{custom_linear.1} parent=47 // pred_check_branch
          %315 = sbr.rel (%p313) target = $region52
        $region51: #{custom_linear.1} parent=47 // pred_region
          %s316 = sand.u32 %s122, 1
          %s317 = scalar_lea.sflag [#allocation4], %s316
          %s318 = sand.u32 %s122, 1
          %s319 = smul.addr %s318, 8
          %s320 = scalar_lea.vmem [#allocation7], %s319
          %322 = dma.done %s317, 128
        $region52: #{custom_linear.1} parent=47 // pred_fallthru
          _
      $region48: #{custom_linear.1} parent=5 // pred_fallthru
        _
    $region6: #{custom_linear.1} parent=1 // loop_footer
      %s20 = sadd.s32 1, %s16
    $region7: #{custom_linear.1} parent=1 // loop_footer_branch
      %15 = sbr.rel target = $region3
    $region8: #{custom_linear.1} parent=1 // loop_exit
      _
    %323 = vsyncpa [#allocation3], 1
    %s324 = scalar_lea.sflag [#allocation3], 1
    %325 = vsyncpa %s324, 1
    %326 = vsyncpa [#allocation6], 1
    %327 = vsyncpa [#allocation4], 1
    %s328 = scalar_lea.sflag [#allocation4], 1
    %329 = vsyncpa %s328, 1

</llo_original>
